<compile_context>
chip_gen: v6e
topology: v6e:2x2x1
jax: 0.10.0
libtpu: 0.0.40
codegen_flags: <defaults>
</compile_context>

<pallas_src>
import functools
import math

import jax
import jax.numpy as jnp
from jax.experimental import pallas as pl
from jax.experimental.pallas import tpu as pltpu


def _new_gelu_f32(x):
    # 0.5 * x * (1 + tanh(sqrt(2/pi) * (x + 0.044715 * x^3)))  -- in f32.
    c = math.sqrt(2.0 / math.pi)
    return 0.5 * x * (1.0 + jnp.tanh(c * (x + 0.044715 * x * x * x)))


def _round_up(x, m):
    return ((x + m - 1) // m) * m


def _vmem_limit_bytes():
    cap = 64 * 1024 * 1024
    try:
        info = pltpu.get_tpu_info()
        cap = int(getattr(info, "vmem_capacity_bytes", cap)) or cap
    except Exception:
        pass
    # Leave headroom below physical VMEM; never ask for more than ~100 MiB.
    return min(int(cap * 0.85), 100 * 1024 * 1024)


def mlp_kernel(x_ref, wfc_ref, bfc_ref, wproj_ref, bproj_ref, o_ref, *scratch,
               th, resident, use_acc):
    # x_ref:     [TM, Cp]  bf16
    # resident:  wfc_ref [Cp, Hp], bfc_ref [1, Hp], wproj_ref [Hp, Cp]  (full)
    # streamed:  wfc_ref [Cp, th], bfc_ref [1, th], wproj_ref [th, Cp]
    # bproj_ref: [1, Cp] f32
    # o_ref:     [TM, Cp] (x dtype); accumulator is o_ref itself when f32,
    #            otherwise the f32 VMEM scratch.
    acc_ref = scratch[0] if use_acc else o_ref
    k = pl.program_id(1)

    @pl.when(k == 0)
    def _init():
        # Fold the projection bias into the accumulator init.
        acc_ref[...] = jnp.broadcast_to(
            bproj_ref[...].astype(acc_ref.dtype), acc_ref.shape)

    if resident:
        off = pl.multiple_of(k * th, th)
        wfc = wfc_ref[:, pl.ds(off, th)]
        bfc = bfc_ref[:, pl.ds(off, th)]
        wproj = wproj_ref[pl.ds(off, th), :]
    else:
        wfc = wfc_ref[...]
        bfc = bfc_ref[...]
        wproj = wproj_ref[...]

    # First linear (bf16 MXU, f32 accumulate) + bias + new_gelu in f32.
    h = jnp.dot(x_ref[...], wfc, preferred_element_type=jnp.float32)
    h = _new_gelu_f32(h + bfc.astype(jnp.float32))

    # Second linear: accumulate this hidden slice's contribution.
    acc_ref[...] += jnp.dot(h.astype(wproj.dtype), wproj,
                            preferred_element_type=jnp.float32
                            ).astype(acc_ref.dtype)

    if use_acc:
        @pl.when(k == pl.num_programs(1) - 1)
        def _finalize():
            o_ref[...] = acc_ref[...].astype(o_ref.dtype)


def mlp_config(M, C, H, out_itemsize, *, force_streamed=False):
    C_pad = _round_up(C, 128)
    H_pad = _round_up(H, 128)

    # Hidden (reduction) tile: ~<=512, multiple of 128, minimal over-rounding.
    n_k = pl.cdiv(H_pad, 512)
    th = _round_up(pl.cdiv(H_pad, n_k), 128)
    H_fin = _round_up(H_pad, th)

    # Row tile: up to 512, multiple of 16 (bf16 sublane packing).
    tm = min(512, _round_up(M, 16))

    vmem_limit = _vmem_limit_bytes()
    budget = int(vmem_limit * 0.9)
    use_acc = out_itemsize < 4  # f32 outputs accumulate straight into o_ref

    def working_set(resident, tm_, th_, hfin_):
        ws = 2 * tm_ * C_pad * 2                 # x tile, double-buffered bf16
        ws += 2 * tm_ * C_pad * out_itemsize     # out tile, double-buffered
        if use_acc:
            ws += tm_ * C_pad * 4                # f32 accumulator scratch
        ws += tm_ * th_ * 4                      # gelu intermediate (f32)
        if resident:
            ws += 2 * C_pad * hfin_ * 2          # both weights, single copy
            ws += (hfin_ + C_pad) * 4            # biases
        else:
            ws += 2 * 2 * C_pad * th_ * 2        # both weight slices, dbl-buf
            ws += 2 * (th_ + C_pad) * 4
        return ws

    resident = (not force_streamed) and working_set(True, tm, th, H_fin) <= budget
    if not resident:
        # Streamed fallback (large C / v7x): shrink tiles until it fits.
        while working_set(False, tm, th, H_fin) > budget and (th > 128 or tm > 128):
            if th > 128:
                th = 128
            else:
                tm = max(128, tm // 2)
        H_fin = _round_up(H_pad, th)

    M_pad = _round_up(M, tm)
    return dict(C_pad=C_pad, H_fin=H_fin, th=th, tm=tm, M_pad=M_pad,
                resident=resident, use_acc=use_acc, vmem_limit=vmem_limit)


def prepare_mlp_params(w_fc, b_fc, w_proj, b_proj, cfg,
                       compute_dtype=jnp.bfloat16):
    """Pad + cast the weights once; cache the result across forward calls."""
    C, H = w_fc.shape
    C_pad, H_fin = cfg["C_pad"], cfg["H_fin"]
    wfc_p = jnp.zeros((C_pad, H_fin), compute_dtype).at[:C, :H].set(
        w_fc.astype(compute_dtype))
    bfc_p = jnp.zeros((1, H_fin), jnp.float32).at[0, :H].set(
        b_fc.astype(jnp.float32))
    wproj_p = jnp.zeros((H_fin, C_pad), compute_dtype).at[:H, :C].set(
        w_proj.astype(compute_dtype))
    bproj_p = jnp.zeros((1, C_pad), jnp.float32).at[0, :C].set(
        b_proj.astype(jnp.float32))
    return wfc_p, bfc_p, wproj_p, bproj_p


def mlp_forward(x, prepared, cfg):
    B, T, C = x.shape
    M = B * T
    C_pad, H_fin, th, tm, M_pad = (cfg["C_pad"], cfg["H_fin"], cfg["th"],
                                   cfg["tm"], cfg["M_pad"])
    resident, use_acc = cfg["resident"], cfg["use_acc"]
    wfc_p, bfc_p, wproj_p, bproj_p = prepared
    compute_dtype = wfc_p.dtype
    out_itemsize = jnp.dtype(x.dtype).itemsize

    x2d = x.reshape(M, C)
    if M_pad == M and C_pad == C:
        x_in = x2d.astype(compute_dtype)          # no padding pass needed
    else:
        x_in = jnp.zeros((M_pad, C_pad), compute_dtype).at[:M, :C].set(
            x2d.astype(compute_dtype))

    grid = (M_pad // tm, H_fin // th)

    if resident:
        # Constant index maps -> each weight is DMA'd exactly once.
        w_specs = [
            pl.BlockSpec((C_pad, H_fin), lambda i, k: (0, 0)),   # W_fc (full)
            pl.BlockSpec((1, H_fin), lambda i, k: (0, 0)),       # b_fc (full)
            pl.BlockSpec((H_fin, C_pad), lambda i, k: (0, 0)),   # W_proj (full)
        ]
    else:
        w_specs = [
            pl.BlockSpec((C_pad, th), lambda i, k: (0, k)),      # W_fc slice
            pl.BlockSpec((1, th), lambda i, k: (0, k)),          # b_fc slice
            pl.BlockSpec((th, C_pad), lambda i, k: (k, 0)),      # W_proj slice
        ]

    m_tiles = M_pad // tm
    w_reads = 1 if resident else m_tiles
    cost = pl.CostEstimate(
        flops=4 * M_pad * C_pad * H_fin,            # two matmuls
        transcendentals=M_pad * H_fin,              # tanh in new_gelu
        bytes_accessed=(M_pad * C_pad * 2
                        + w_reads * (2 * C_pad * H_fin * 2 + (H_fin + C_pad) * 4)
                        + M_pad * C_pad * out_itemsize),
    )

    kernel = functools.partial(mlp_kernel, th=th, resident=resident,
                               use_acc=use_acc)
    scratch = [pltpu.VMEM((tm, C_pad), jnp.float32)] if use_acc else []

    out = pl.pallas_call(
        kernel,
        out_shape=jax.ShapeDtypeStruct((M_pad, C_pad), x.dtype),
        grid_spec=pltpu.PrefetchScalarGridSpec(
            num_scalar_prefetch=0,
            grid=grid,
            in_specs=[pl.BlockSpec((tm, C_pad), lambda i, k: (i, 0))] + w_specs
                     + [pl.BlockSpec((1, C_pad), lambda i, k: (0, 0))],
            out_specs=pl.BlockSpec((tm, C_pad), lambda i, k: (i, 0)),
            scratch_shapes=scratch,
        ),
        compiler_params=pltpu.CompilerParams(
            dimension_semantics=("parallel", "arbitrary"),
            vmem_limit_bytes=cfg["vmem_limit"],
        ),
        cost_estimate=cost,
    )(x_in, wfc_p, bfc_p, wproj_p, bproj_p)

    if M_pad == M and C_pad == C:
        return out.reshape(B, T, C)
    return out[:M, :C].reshape(B, T, C)


def mlp(x, w_fc, b_fc, w_proj, b_proj, *, force_streamed=False):
    """Convenience one-shot wrapper (prepare + forward)."""
    B, T, C = x.shape
    cfg = mlp_config(B * T, C, w_fc.shape[1], jnp.dtype(x.dtype).itemsize,
                     force_streamed=force_streamed)
    prepared = prepare_mlp_params(w_fc, b_fc, w_proj, b_proj, cfg)
    return mlp_forward(x, prepared, cfg)


def reference_mlp(x, w_fc, b_fc, w_proj, b_proj):
    h = _new_gelu_f32(jnp.einsum("btc,ch->bth", x, w_fc) + b_fc)
    return jnp.einsum("bth,hc->btc", h, w_proj) + b_proj


def _make_params(key, C, H):
    k1, k2, k3, k4 = jax.random.split(key, 4)
    w_fc = jax.random.uniform(k1, (C, H), jnp.float32,
                              -1.0 / math.sqrt(C), 1.0 / math.sqrt(C))
    b_fc = jax.random.uniform(k2, (H,), jnp.float32,
                              -1.0 / math.sqrt(C), 1.0 / math.sqrt(C))
    w_proj = jax.random.uniform(k3, (H, C), jnp.float32,
                                -1.0 / math.sqrt(H), 1.0 / math.sqrt(H))
    b_proj = jax.random.uniform(k4, (C,), jnp.float32,
                                -1.0 / math.sqrt(H), 1.0 / math.sqrt(H))
    return w_fc, b_fc, w_proj, b_proj


if __name__ == "__main__":
    key = jax.random.PRNGKey(0)

    # Case 1: small GPT-style config (n_embd=32, bias=True, dropout=0.0);
    # exercises the VMEM-resident-weights path.
    B, T, C = 2, 8, 32
    H = 4 * C
    kx, kp = jax.random.split(key, 2)
    x = jax.random.normal(kx, (B, T, C), dtype=jnp.float32)
    w_fc, b_fc, w_proj, b_proj = _make_params(kp, C, H)

    y = mlp(x, w_fc, b_fc, w_proj, b_proj)
    jax.block_until_ready(y)
    y_ref = reference_mlp(x, w_fc, b_fc, w_proj, b_proj)
    assert y.shape == (B, T, C)
    assert jnp.allclose(y, y_ref, atol=3e-2, rtol=3e-2), "case1 mismatch"

    # Case 2: ragged shapes (exercises M/C/H zero-padding paths).
    B2, T2, C2 = 1, 20, 48
    H2 = 4 * C2
    kx2, kp2 = jax.random.split(jax.random.PRNGKey(1), 2)
    x2 = jax.random.normal(kx2, (B2, T2, C2), dtype=jnp.float32)
    p2 = _make_params(kp2, C2, H2)

    y2 = mlp(x2, *p2)
    jax.block_until_ready(y2)
    y2_ref = reference_mlp(x2, *p2)
    assert y2.shape == (B2, T2, C2)
    assert jnp.allclose(y2, y2_ref, atol=3e-2, rtol=3e-2), "case2 mismatch"

    # Case 3: forced weight-streaming fallback (the large-C / v7x code path)
    # at small shapes; exercises the (0,k)/(k,0) specs + multi-k accumulation.
    B3, T3, C3 = 2, 16, 256
    H3 = 4 * C3
    kx3, kp3 = jax.random.split(jax.random.PRNGKey(2), 2)
    x3 = jax.random.normal(kx3, (B3, T3, C3), dtype=jnp.float32)
    p3 = _make_params(kp3, C3, H3)

    y3 = mlp(x3, *p3, force_streamed=True)
    jax.block_until_ready(y3)
    y3_ref = reference_mlp(x3, *p3)
    assert y3.shape == (B3, T3, C3)
    assert jnp.allclose(y3, y3_ref, atol=5e-2, rtol=5e-2), "case3 mismatch"

    print("KERNEL_OK")
</pallas_src>

<mosaic_0001>
module attributes {stable_mosaic.version = 11 : i64} {
  func.func @mlp_kernel(%arg0: i32, %arg1: i32, %arg2: memref<16x128xbf16, #tpu.memory_space<vmem>>, %arg3: memref<128x128xbf16, #tpu.memory_space<vmem>>, %arg4: memref<1x128xf32, #tpu.memory_space<vmem>>, %arg5: memref<128x128xbf16, #tpu.memory_space<vmem>>, %arg6: memref<1x128xf32, #tpu.memory_space<vmem>>, %arg7: memref<16x128xf32, #tpu.memory_space<vmem>>) attributes {dimension_semantics = [#tpu.dimension_semantics<parallel>, #tpu.dimension_semantics<arbitrary>], iteration_bounds = array<i64: 1, 1>, scalar_prefetch = 0 : i64, scratch_operands = 0 : i64, tpu.core_type = #tpu.core_type<tc>, window_params = [{transform_indices = @transform_0, window_bounds = array<i64: 16, 128>}, {pipeline_mode = #tpu.pipeline_mode<synchronous>, transform_indices = @transform_1, window_bounds = array<i64: 128, 128>}, {pipeline_mode = #tpu.pipeline_mode<synchronous>, transform_indices = @transform_2, window_bounds = array<i64: 1, 128>}, {pipeline_mode = #tpu.pipeline_mode<synchronous>, transform_indices = @transform_3, window_bounds = array<i64: 128, 128>}, {pipeline_mode = #tpu.pipeline_mode<synchronous>, transform_indices = @transform_4, window_bounds = array<i64: 1, 128>}, {transform_indices = @transform_5, window_bounds = array<i64: 16, 128>}]} {
    %c0_i32 = arith.constant 0 : i32
    %0 = arith.cmpi eq, %arg1, %c0_i32 : i32
    %1 = arith.extui %0 : i1 to i32
    %c0_i32_0 = arith.constant 0 : i32
    %2 = arith.cmpi ne, %1, %c0_i32_0 : i32
    scf.if %2 {
      %c0_14 = arith.constant 0 : index
      %c0_15 = arith.constant 0 : index
      %33 = vector.load %arg6[%c0_14, %c0_15] : memref<1x128xf32, #tpu.memory_space<vmem>>, vector<1x128xf32>
      %34 = vector.shape_cast %33 : vector<1x128xf32> to vector<1x128xf32>
      %35 = vector.broadcast %34 : vector<1x128xf32> to vector<16x128xf32>
      %c0_16 = arith.constant 0 : index
      %c0_17 = arith.constant 0 : index
      %36 = vector.load %arg7[%c0_16, %c0_17] : memref<16x128xf32, #tpu.memory_space<vmem>>, vector<16x128xf32>
      tpu.vector_store %arg7[%c0_16, %c0_17], %35 {strides = array<i32>} : memref<16x128xf32, #tpu.memory_space<vmem>>, vector<16x128xf32>,
    } else {
    }
    %c128_i32 = arith.constant 128 : i32
    %3 = arith.muli %arg1, %c128_i32 : i32
    %4 = tpu.assume_multiple %3, 128 : i32
    %c0 = arith.constant 0 : index
    %5 = arith.index_cast %4 : i32 to index
    %6 = vector.load %arg3[%c0, %5] : memref<128x128xbf16, #tpu.memory_space<vmem>>, vector<128x128xbf16>
    %c0_1 = arith.constant 0 : index
    %7 = arith.index_cast %4 : i32 to index
    %8 = vector.load %arg4[%c0_1, %7] : memref<1x128xf32, #tpu.memory_space<vmem>>, vector<1x128xf32>
    %9 = arith.index_cast %4 : i32 to index
    %c0_2 = arith.constant 0 : index
    %10 = vector.load %arg5[%9, %c0_2] : memref<128x128xbf16, #tpu.memory_space<vmem>>, vector<128x128xbf16>
    %c0_3 = arith.constant 0 : index
    %c0_4 = arith.constant 0 : index
    %11 = vector.load %arg2[%c0_3, %c0_4] : memref<16x128xbf16, #tpu.memory_space<vmem>>, vector<16x128xbf16>
    %cst = arith.constant dense<0.000000e+00> : vector<16x128xf32>
    %12 = tpu.matmul %11, %6, %cst {dimension_numbers = #tpu.dot_dimension_numbers<[1], [0], [0], [1], [0, 0, 1, 1], [], []>} : vector<16x128xbf16>, vector<128x128xbf16>, vector<16x128xf32> -> vector<16x128xf32>
    %13 = vector.broadcast %8 : vector<1x128xf32> to vector<16x128xf32>
    %14 = arith.addf %12, %13 : vector<16x128xf32>
    %cst_5 = arith.constant 5.000000e-01 : f32
    %15 = vector.broadcast %cst_5 : f32 to vector<16x128xf32>
    %16 = arith.mulf %15, %14 : vector<16x128xf32>
    %cst_6 = arith.constant 4.471500e-02 : f32
    %17 = vector.broadcast %cst_6 : f32 to vector<16x128xf32>
    %18 = arith.mulf %17, %14 : vector<16x128xf32>
    %19 = arith.mulf %18, %14 : vector<16x128xf32>
    %20 = arith.mulf %19, %14 : vector<16x128xf32>
    %21 = arith.addf %14, %20 : vector<16x128xf32>
    %cst_7 = arith.constant 0.797884583 : f32
    %22 = vector.broadcast %cst_7 : f32 to vector<16x128xf32>
    %23 = arith.mulf %22, %21 : vector<16x128xf32>
    %24 = math.tanh %23 : vector<16x128xf32>
    %cst_8 = arith.constant 1.000000e+00 : f32
    %25 = vector.broadcast %cst_8 : f32 to vector<16x128xf32>
    %26 = arith.addf %25, %24 : vector<16x128xf32>
    %27 = arith.mulf %16, %26 : vector<16x128xf32>
    %c0_9 = arith.constant 0 : index
    %c0_10 = arith.constant 0 : index
    %28 = vector.load %arg7[%c0_9, %c0_10] : memref<16x128xf32, #tpu.memory_space<vmem>>, vector<16x128xf32>
    %29 = arith.truncf %27 : vector<16x128xf32> to vector<16x128xbf16>
    %cst_11 = arith.constant dense<0.000000e+00> : vector<16x128xf32>
    %30 = tpu.matmul %29, %10, %cst_11 {dimension_numbers = #tpu.dot_dimension_numbers<[1], [0], [0], [1], [0, 0, 1, 1], [], []>} : vector<16x128xbf16>, vector<128x128xbf16>, vector<16x128xf32> -> vector<16x128xf32>
    %31 = arith.addf %28, %30 : vector<16x128xf32>
    %c0_12 = arith.constant 0 : index
    %c0_13 = arith.constant 0 : index
    %32 = vector.load %arg7[%c0_12, %c0_13] : memref<16x128xf32, #tpu.memory_space<vmem>>, vector<16x128xf32>
    tpu.vector_store %arg7[%c0_12, %c0_13], %31 {strides = array<i32>} : memref<16x128xf32, #tpu.memory_space<vmem>>, vector<16x128xf32>,
    return
  }
  func.func @transform_0(%arg0: i32, %arg1: i32) -> (i32, i32) {
    %c0_i32 = arith.constant 0 : i32
    %c0_i32_0 = arith.constant 0 : i32
    return %arg0, %c0_i32 : i32, i32
  }
  func.func @transform_1(%arg0: i32, %arg1: i32) -> (i32, i32) {
    %c0_i32 = arith.constant 0 : i32
    %c0_i32_0 = arith.constant 0 : i32
    %c0_i32_1 = arith.constant 0 : i32
    return %c0_i32, %c0_i32_0 : i32, i32
  }
  func.func @transform_2(%arg0: i32, %arg1: i32) -> (i32, i32) {
    %c0_i32 = arith.constant 0 : i32
    %c0_i32_0 = arith.constant 0 : i32
    %c0_i32_1 = arith.constant 0 : i32
    return %c0_i32, %c0_i32_0 : i32, i32
  }
  func.func @transform_3(%arg0: i32, %arg1: i32) -> (i32, i32) {
    %c0_i32 = arith.constant 0 : i32
    %c0_i32_0 = arith.constant 0 : i32
    %c0_i32_1 = arith.constant 0 : i32
    return %c0_i32, %c0_i32_0 : i32, i32
  }
  func.func @transform_4(%arg0: i32, %arg1: i32) -> (i32, i32) {
    %c0_i32 = arith.constant 0 : i32
    %c0_i32_0 = arith.constant 0 : i32
    %c0_i32_1 = arith.constant 0 : i32
    return %c0_i32, %c0_i32_0 : i32, i32
  }
  func.func @transform_5(%arg0: i32, %arg1: i32) -> (i32, i32) {
    %c0_i32 = arith.constant 0 : i32
    %c0_i32_0 = arith.constant 0 : i32
    return %arg0, %c0_i32 : i32, i32
  }
}

</mosaic_0001>

<llo_original>
// kernel: tpu_custom_call.1
$region0: #{tpu_custom_call.1}
  #allocation0 [shape = 'u32[]', space=smem, size = 0x4, offset = 0x4, fixed_abs, tag = 'smem constant byte address 0x4 - core index']
  #allocation1 [shape = 'u32[144,128]{1,0:T(1,128)}', space=vmem, size = 0x12000, scoped, tag = 'internal scratch']
  %s0 = inlined_call_operand.hbm [shape: bf16[16,128], index: 0, kind: input, shape index: {}]
  %s1 = inlined_call_operand.hbm [shape: bf16[128,128], index: 1, kind: input, shape index: {}]
  %s2 = inlined_call_operand.vmem [shape: f32[1,128], index: 2, kind: input, shape index: {}]
  %s3 = inlined_call_operand.hbm [shape: bf16[128,128], index: 3, kind: input, shape index: {}]
  %s4 = inlined_call_operand.vmem [shape: f32[1,128], index: 4, kind: input, shape index: {}]
  %s5 = inlined_call_operand.hbm [shape: f32[16,128], index: 5, kind: output, shape index: {}]
  %s6 = sld [smem:[#allocation0]]
  $region46: #{tpu_custom_call.1} parent=0
    _
  %s8 = ssub.s32 1, %s6
  %s9 = scalar_select 0, %s8, %s6
  $region1: #{tpu_custom_call.1} parent=0
    #allocation2 [shape = 'u8[4096]{0}', space=vmem, size = 0x1000, scoped, tag = 'input window, operand 0, single buffered']
    #allocation3 [shape = 's32[1]{0}', space=sflag, size = 0x4, scoped, tag = 'scoped memory for tpu_custom_call.1']
    #allocation4 [shape = 's32[1]{0}', space=sflag, size = 0x4, scoped, tag = 'scoped memory for tpu_custom_call.1']
    #allocation5 [shape = 'u8[32768]{0}', space=vmem, size = 0x8000, scoped, tag = 'input window, operand 1, single buffered']
    #allocation6 [shape = 's32[1]{0}', space=sflag, size = 0x4, scoped, tag = 'scoped memory for tpu_custom_call.1']
    #allocation7 [shape = 'u8[32768]{0}', space=vmem, size = 0x8000, scoped, tag = 'input window, operand 3, single buffered']
    #allocation8 [shape = 'u8[8192]{0}', space=vmem, size = 0x2000, scoped, tag = 'output window, operand 0, single buffered']
    %10 = vsyncpa [#allocation3], 0
    %11 = vsyncpa [#allocation6], 0
    %12 = vsyncpa [#allocation4], 0
    // Predicated region
    $region2: #{tpu_custom_call.1} parent=1 // pred_check
      _
    $region3: #{tpu_custom_call.1} parent=1 // pred_check_branch
      %14 = sbr.rel (0) target = $region5
    $region4: #{tpu_custom_call.1} parent=1 // pred_region
      %s16 = ssub.s32 128, 128
      %17 = vsyncadd [#allocation3], %s16
      %s18 = sshll.u32 [#allocation2], 4
      %s19 = int_to_ptr.vmem [resolvable:$true] %s18
      %24 = dma.hbm_to_vmem [thread:$0]  %s0, 128, %s19, [#allocation3], 64, 64, 4
    $region5: #{tpu_custom_call.1} parent=1 // pred_fallthru
      _
    // Predicated region
    $region6: #{tpu_custom_call.1} parent=1 // pred_check
      _
    $region7: #{tpu_custom_call.1} parent=1 // pred_check_branch
      %26 = sbr.rel (0) target = $region9
    $region8: #{tpu_custom_call.1} parent=1 // pred_region
      %s28 = ssub.s32 1024, 1024
      %29 = vsyncadd [#allocation6], %s28
      %s30 = sshll.u32 [#allocation5], 4
      %s31 = int_to_ptr.vmem [resolvable:$true] %s30
      %36 = dma.hbm_to_vmem [thread:$0]  %s1, 1024, %s31, [#allocation6], 64, 64, 4
    $region9: #{tpu_custom_call.1} parent=1 // pred_fallthru
      _
    // Predicated region
    $region10: #{tpu_custom_call.1} parent=1 // pred_check
      _
    $region11: #{tpu_custom_call.1} parent=1 // pred_check_branch
      %38 = sbr.rel (0) target = $region13
    $region12: #{tpu_custom_call.1} parent=1 // pred_region
      _
    $region13: #{tpu_custom_call.1} parent=1 // pred_fallthru
      _
    // Predicated region
    $region14: #{tpu_custom_call.1} parent=1 // pred_check
      _
    $region15: #{tpu_custom_call.1} parent=1 // pred_check_branch
      %40 = sbr.rel (0) target = $region17
    $region16: #{tpu_custom_call.1} parent=1 // pred_region
      %s42 = ssub.s32 1024, 1024
      %43 = vsyncadd [#allocation6], %s42
      %s44 = sshll.u32 [#allocation7], 4
      %s45 = int_to_ptr.vmem [resolvable:$true] %s44
      %50 = dma.hbm_to_vmem [thread:$0]  %s3, 1024, %s45, [#allocation6], 64, 64, 4
    $region17: #{tpu_custom_call.1} parent=1 // pred_fallthru
      _
    // Predicated region
    $region18: #{tpu_custom_call.1} parent=1 // pred_check
      _
    $region19: #{tpu_custom_call.1} parent=1 // pred_check_branch
      %52 = sbr.rel (0) target = $region21
    $region20: #{tpu_custom_call.1} parent=1 // pred_region
      _
    $region21: #{tpu_custom_call.1} parent=1 // pred_fallthru
      _
    // Predicated region
    $region22: #{tpu_custom_call.1} parent=1 // pred_check
      _
    $region23: #{tpu_custom_call.1} parent=1 // pred_check_branch
      %54 = sbr.rel (0) target = $region25
    $region24: #{tpu_custom_call.1} parent=1 // pred_region
      %55 = dma.done [#allocation3], 128
    $region25: #{tpu_custom_call.1} parent=1 // pred_fallthru
      _
    // Predicated region
    $region26: #{tpu_custom_call.1} parent=1 // pred_check
      _
    $region27: #{tpu_custom_call.1} parent=1 // pred_check_branch
      %57 = sbr.rel (0) target = $region29
    $region28: #{tpu_custom_call.1} parent=1 // pred_region
      %58 = dma.done [#allocation6], 1024
    $region29: #{tpu_custom_call.1} parent=1 // pred_fallthru
      _
    // Predicated region
    $region30: #{tpu_custom_call.1} parent=1 // pred_check
      _
    $region31: #{tpu_custom_call.1} parent=1 // pred_check_branch
      %60 = sbr.rel (0) target = $region33
    $region32: #{tpu_custom_call.1} parent=1 // pred_region
      %61 = dma.done [#allocation6], 1024
    $region33: #{tpu_custom_call.1} parent=1 // pred_fallthru
      _
    %p63 = scmp.eq.s32.totalorder 0, 0
    // Predicated region
    $region34: #{tpu_custom_call.1} parent=1 // pred_check
      %p64 = pneg %p63
    $region35: #{tpu_custom_call.1} parent=1 // pred_check_branch
      %66 = sbr.rel (%p64) target = $region37
    $region36: #{tpu_custom_call.1} parent=1 // pred_region
      %v67 = vld [vmem:[%s4] sm:$0x1]
      %v69 = vlaneseq
      %v70 = vshrl.u32 %v69, 7
      %v71 = vsub.s32 0, %v70
      %v72 = vrot.slane %v67, %v71
      %74 = vst [vmem:[#allocation8] sm:$0xff] %v72
      %75 = vst [vmem:[#allocation8 + $0x8] sm:$0xff] %v72
    $region37: #{tpu_custom_call.1} parent=1 // pred_fallthru
      _
    %s76 = smul.u32 0, 128
    %s77 = sshra.s32 %s76, 7
    %s78 = sand.u32 %s76, 127
    %s79 = smul.addr %s77, 4
    %s80 = scalar_lea.vmem [#allocation5], %s79
    %v81 = vld [vmem:[%s80] sm:$0xf]
    %v82 = vld [vmem:[%s80 + $0x4] sm:$0xf]
    %v83 = vld [vmem:[%s80 + $0x8] sm:$0xf]
    %v84 = vld [vmem:[%s80 + $0xc] sm:$0xf]
    %v85 = vld [vmem:[%s80 + $0x10] sm:$0xf]
    %v86 = vld [vmem:[%s80 + $0x14] sm:$0xf]
    %v87 = vld [vmem:[%s80 + $0x18] sm:$0xf]
    %v88 = vld [vmem:[%s80 + $0x1c] sm:$0xf]
    %v89 = vld [vmem:[%s80 + $0x20] sm:$0xf]
    %v90 = vld [vmem:[%s80 + $0x24] sm:$0xf]
    %v91 = vld [vmem:[%s80 + $0x28] sm:$0xf]
    %v92 = vld [vmem:[%s80 + $0x2c] sm:$0xf]
    %v93 = vld [vmem:[%s80 + $0x30] sm:$0xf]
    %v94 = vld [vmem:[%s80 + $0x34] sm:$0xf]
    %v95 = vld [vmem:[%s80 + $0x38] sm:$0xf]
    %v96 = vld [vmem:[%s80 + $0x3c] sm:$0xf]
    %s97 = scalar_lea.vmem %s2, %s77
    %v98 = vld [vmem:[%s97] sm:$0x1]
    %s99 = sshra.s32 %s76, 3
    %s100 = sand.u32 %s76, 7
    %s101 = smul.addr %s99, 4
    %s102 = scalar_lea.vmem [#allocation7], %s101
    %v103 = vld [vmem:[%s102] sm:$0xf]
    %v104 = vld [vmem:[%s102 + $0x4] sm:$0xf]
    %v105 = vld [vmem:[%s102 + $0x8] sm:$0xf]
    %v106 = vld [vmem:[%s102 + $0xc] sm:$0xf]
    %v107 = vld [vmem:[%s102 + $0x10] sm:$0xf]
    %v108 = vld [vmem:[%s102 + $0x14] sm:$0xf]
    %v109 = vld [vmem:[%s102 + $0x18] sm:$0xf]
    %v110 = vld [vmem:[%s102 + $0x1c] sm:$0xf]
    %v111 = vld [vmem:[%s102 + $0x20] sm:$0xf]
    %v112 = vld [vmem:[%s102 + $0x24] sm:$0xf]
    %v113 = vld [vmem:[%s102 + $0x28] sm:$0xf]
    %v114 = vld [vmem:[%s102 + $0x2c] sm:$0xf]
    %v115 = vld [vmem:[%s102 + $0x30] sm:$0xf]
    %v116 = vld [vmem:[%s102 + $0x34] sm:$0xf]
    %v117 = vld [vmem:[%s102 + $0x38] sm:$0xf]
    %v118 = vld [vmem:[%s102 + $0x3c] sm:$0xf]
    %v119 = vld [vmem:[#allocation2] sm:$0xf]
    %v120 = vld [vmem:[#allocation2 + $0x4] sm:$0xf]
    %v122 = vlaneseq
    %v123 = vshrl.u32 %v122, 7
    %v124 = vsub.s32 0, %v123
    %v125 = vrot.slane %v98, %v124
    %v129 = vunpack.c.l.b16 %v119
    %v130 = vunpack.c.l.b16 %v120
    %v131 = vpack.c.b16 %v130, %v129
    %v149 = vunpack.c.l.b16 %v81
    %v150 = vunpack.c.l.b16 %v82
    %v151 = vunpack.c.l.b16 %v83
    %v152 = vunpack.c.l.b16 %v84
    %v153 = vunpack.c.l.b16 %v85
    %v154 = vunpack.c.l.b16 %v86
    %v155 = vunpack.c.l.b16 %v87
    %v156 = vunpack.c.l.b16 %v88
    %v157 = vunpack.c.l.b16 %v89
    %v158 = vunpack.c.l.b16 %v90
    %v159 = vunpack.c.l.b16 %v91
    %v160 = vunpack.c.l.b16 %v92
    %v161 = vunpack.c.l.b16 %v93
    %v162 = vunpack.c.l.b16 %v94
    %v163 = vunpack.c.l.b16 %v95
    %v164 = vunpack.c.l.b16 %v96
    %v165 = vpack.c.b16 %v150, %v149
    %v166 = vpack.c.b16 %v152, %v151
    %v167 = vpack.c.b16 %v154, %v153
    %v168 = vpack.c.b16 %v156, %v155
    %v169 = vpack.c.b16 %v158, %v157
    %v170 = vpack.c.b16 %v160, %v159
    %v171 = vpack.c.b16 %v162, %v161
    %v172 = vpack.c.b16 %v164, %v163
    %181 = vmatprep.subr.bf16.mxu0 0
    %182 = vmatpush1.bf16.msra.mxu0 %v172
    %183 = vmatprep.subr.bf16.mxu0 0
    %184 = vmatpush1.bf16.msra.mxu0 %v171
    %185 = vmatprep.subr.bf16.mxu0 0
    %186 = vmatpush1.bf16.msra.mxu0 %v170
    %187 = vmatprep.subr.bf16.mxu0 0
    %188 = vmatpush1.bf16.msra.mxu0 %v169
    %189 = vmatprep.subr.bf16.mxu0 0
    %190 = vmatpush1.bf16.msra.mxu0 %v168
    %191 = vmatprep.subr.bf16.mxu0 0
    %192 = vmatpush1.bf16.msra.mxu0 %v167
    %193 = vmatprep.subr.bf16.mxu0 0
    %194 = vmatpush1.bf16.msra.mxu0 %v166
    %195 = vmatprep.subr.bf16.mxu0 0
    %196 = vmatpush1.bf16.msra.mxu0 %v165
    %197 = vmatprep.subr.bf16.mxu0 0
    %198 = vmatpush2.bf16.msra.mxu0 0
    %199 = vmatprep.subr.bf16.mxu0 0
    %200 = vmatpush2.bf16.msra.mxu0 0
    %201 = vmatprep.subr.bf16.mxu0 0
    %202 = vmatpush2.bf16.msra.mxu0 0
    %203 = vmatprep.subr.bf16.mxu0 0
    %204 = vmatpush2.bf16.msra.mxu0 0
    %205 = vmatprep.subr.bf16.mxu0 0
    %206 = vmatpush2.bf16.msra.mxu0 0
    %207 = vmatprep.subr.bf16.mxu0 0
    %208 = vmatpush2.bf16.msra.mxu0 0
    %209 = vmatprep.subr.bf16.mxu0 0
    %210 = vmatpush2.bf16.msra.mxu0 0
    %211 = vmatprep.subr.bf16.mxu0 0
    %212 = vmatpush2.bf16.msra.mxu0 0
    %213 = vmatprep.mubr.bf16.mxu0 0
    %214 = vmatmul.mubr.bf16.gmra.mxu0 %v131
    %v215 = vpop.f32.mrf.mxu0
    %v216 = vadd.f32 %v125, %v215
    %v217 = vpop.f32.mrf.mxu0
    %v218 = vpop.f32.mrf.mxu0
    %v219 = vadd.f32 %v125, %v218
    %v220 = vpop.f32.mrf.mxu0
    %221 = vdwg.mxu0
    %v222 = vmul.f32 %v216, 0.5
    %v223 = vmul.f32 %v219, 0.5
    %v224 = vmul.f32 %v216, 0.044715
    %v225 = vmul.f32 %v219, 0.044715
    %v226 = vmul.f32 %v224, %v216
    %v227 = vmul.f32 %v225, %v219
    %v228 = vmul.f32 %v226, %v216
    %v229 = vmul.f32 %v227, %v219
    %v230 = vadd.f32 %v216, %v228
    %v231 = vadd.f32 %v219, %v229
    %v232 = vmul.f32 %v230, 0.7978846
    %v233 = vmul.f32 %v231, 0.7978846
    %v234 = vtanh.pop %v232
    %v235 = vtanh.pop %v233
    %v236 = vadd.f32 %v234, 1.0
    %v237 = vadd.f32 %v235, 1.0
    %v238 = vmul.f32 %v222, %v236
    %v239 = vmul.f32 %v223, %v237
    %v240 = vld [vmem:[#allocation8] sm:$0xff]
    %v241 = vld [vmem:[#allocation8 + $0x8] sm:$0xff]
    %v242 = vpack.c.bf16 %v239, %v238
    %v259 = vunpack.c.l.b16 %v103
    %v260 = vunpack.c.l.b16 %v104
    %v261 = vunpack.c.l.b16 %v105
    %v262 = vunpack.c.l.b16 %v106
    %v263 = vunpack.c.l.b16 %v107
    %v264 = vunpack.c.l.b16 %v108
    %v265 = vunpack.c.l.b16 %v109
    %v266 = vunpack.c.l.b16 %v110
    %v267 = vunpack.c.l.b16 %v111
    %v268 = vunpack.c.l.b16 %v112
    %v269 = vunpack.c.l.b16 %v113
    %v270 = vunpack.c.l.b16 %v114
    %v271 = vunpack.c.l.b16 %v115
    %v272 = vunpack.c.l.b16 %v116
    %v273 = vunpack.c.l.b16 %v117
    %v274 = vunpack.c.l.b16 %v118
    %v275 = vpack.c.b16 %v260, %v259
    %v276 = vpack.c.b16 %v262, %v261
    %v277 = vpack.c.b16 %v264, %v263
    %v278 = vpack.c.b16 %v266, %v265
    %v279 = vpack.c.b16 %v268, %v267
    %v280 = vpack.c.b16 %v270, %v269
    %v281 = vpack.c.b16 %v272, %v271
    %v282 = vpack.c.b16 %v274, %v273
    %291 = vmatprep.subr.bf16.mxu0 0
    %292 = vmatpush1.bf16.msra.mxu0 %v282
    %293 = vmatprep.subr.bf16.mxu0 0
    %294 = vmatpush1.bf16.msra.mxu0 %v281
    %295 = vmatprep.subr.bf16.mxu0 0
    %296 = vmatpush1.bf16.msra.mxu0 %v280
    %297 = vmatprep.subr.bf16.mxu0 0
    %298 = vmatpush1.bf16.msra.mxu0 %v279
    %299 = vmatprep.subr.bf16.mxu0 0
    %300 = vmatpush1.bf16.msra.mxu0 %v278
    %301 = vmatprep.subr.bf16.mxu0 0
    %302 = vmatpush1.bf16.msra.mxu0 %v277
    %303 = vmatprep.subr.bf16.mxu0 0
    %304 = vmatpush1.bf16.msra.mxu0 %v276
    %305 = vmatprep.subr.bf16.mxu0 0
    %306 = vmatpush1.bf16.msra.mxu0 %v275
    %307 = vmatprep.subr.bf16.mxu0 0
    %308 = vmatpush2.bf16.msra.mxu0 0
    %309 = vmatprep.subr.bf16.mxu0 0
    %310 = vmatpush2.bf16.msra.mxu0 0
    %311 = vmatprep.subr.bf16.mxu0 0
    %312 = vmatpush2.bf16.msra.mxu0 0
    %313 = vmatprep.subr.bf16.mxu0 0
    %314 = vmatpush2.bf16.msra.mxu0 0
    %315 = vmatprep.subr.bf16.mxu0 0
    %316 = vmatpush2.bf16.msra.mxu0 0
    %317 = vmatprep.subr.bf16.mxu0 0
    %318 = vmatpush2.bf16.msra.mxu0 0
    %319 = vmatprep.subr.bf16.mxu0 0
    %320 = vmatpush2.bf16.msra.mxu0 0
    %321 = vmatprep.subr.bf16.mxu0 0
    %322 = vmatpush2.bf16.msra.mxu0 0
    %323 = vmatprep.mubr.bf16.mxu0 0
    %324 = vmatmul.mubr.bf16.gmra.mxu0 %v242
    %v325 = vpop.f32.mrf.mxu0
    %v326 = vadd.f32 0.0, %v325
    %v327 = vpop.f32.mrf.mxu0
    %v328 = vpop.f32.mrf.mxu0
    %v329 = vadd.f32 0.0, %v328
    %v330 = vpop.f32.mrf.mxu0
    %331 = vdwg.mxu0
    %v332 = vadd.f32 %v240, %v326
    %v333 = vadd.f32 %v241, %v329
    %334 = vst [vmem:[#allocation8] sm:$0xff] %v332
    %335 = vst [vmem:[#allocation8 + $0x8] sm:$0xff] %v333
    // Predicated region
    $region38: #{tpu_custom_call.1} parent=1 // pred_check
      _
    $region39: #{tpu_custom_call.1} parent=1 // pred_check_branch
      %337 = sbr.rel (0) target = $region41
    $region40: #{tpu_custom_call.1} parent=1 // pred_region
      %s339 = ssub.s32 256, 256
      %340 = vsyncadd [#allocation4], %s339
      %s341 = sshll.u32 [#allocation8], 4
      %s342 = int_to_ptr.vmem [resolvable:$true] %s341
      %347 = dma.vmem_to_hbm [thread:$0]  %s342, 256, %s5, [#allocation4], 128, 128, 8
    $region41: #{tpu_custom_call.1} parent=1 // pred_fallthru
      _
    // Predicated region
    $region42: #{tpu_custom_call.1} parent=1 // pred_check
      _
    $region43: #{tpu_custom_call.1} parent=1 // pred_check_branch
      %349 = sbr.rel (0) target = $region45
    $region44: #{tpu_custom_call.1} parent=1 // pred_region
      %350 = dma.done [#allocation4], 256
    $region45: #{tpu_custom_call.1} parent=1 // pred_fallthru
      _
    %351 = vsyncpa [#allocation3], 1
    %352 = vsyncpa [#allocation6], 1
    %353 = vsyncpa [#allocation4], 1

</llo_original>
